<compile_context>
chip_gen: v5e
topology: v5e:2x2
jax: 0.10.0
libtpu: 0.0.40
codegen_flags: <defaults>
</compile_context>

<pallas_src>
import jax
import jax.numpy as jnp
from jax.experimental import pallas as pl
from jax.experimental.pallas import tpu as pltpu


def mlp_kernel(x1_ref, x2_ref, w1_ref, b1_ref, w2_ref, b2_ref, o_ref):
    # Fold the elementwise add into fc1 on the MXU:
    #   (x1 + x2) @ W1 == x1 @ W1 + x2 @ W1   (f32 accumulation)
    h = jnp.dot(x1_ref[...], w1_ref[...], preferred_element_type=jnp.float32)
    h = h + jnp.dot(x2_ref[...], w1_ref[...], preferred_element_type=jnp.float32)
    # bias + ReLU on the VPU.
    h = jnp.maximum(h + b1_ref[...], 0.0)
    # fc2 on the MXU + bias.  w2 / b2 are lane-padded to a multiple of 128
    # columns in the wrapper, so this store is lane-dense (no masked vst).
    out = jnp.dot(h, w2_ref[...], preferred_element_type=jnp.float32) + b2_ref[...]
    o_ref[...] = out.astype(o_ref.dtype)


def mlp_forward(input1, input2, w1, b1, w2, b2, *, block_batch=512):
    """Fused add -> fc1 -> relu -> fc2 forward, gridded over the batch dim."""
    batch, in_features = input1.shape
    hidden = w1.shape[1]
    num_classes = w2.shape[1]

    # --- Lane-dense output -------------------------------------------------
    # Pad fc2's OUTPUT columns up to a multiple of 128 once, on the tiny
    # weight/bias (not on the activation stream).  Extra columns are zero and
    # are sliced off below; the kernel's output stores become full 128-lane
    # vst instead of 16-lane masked partial stores.
    out_cols = max(128, pl.cdiv(num_classes, 128) * 128)
    if out_cols != num_classes:
        w2 = jnp.pad(w2, ((0, 0), (0, out_cols - num_classes)))
        b2 = jnp.pad(b2, (0, out_cols - num_classes))
    w1 = w1.astype(jnp.float32)
    w2 = w2.astype(jnp.float32)
    b1 = b1.reshape(1, hidden).astype(jnp.float32)
    b2 = b2.reshape(1, out_cols).astype(jnp.float32)

    # --- Batch tile ---------------------------------------------------------
    # Large tile (memory-bound kernel), but keep the grid at >= ~4 steps so
    # both v7x TensorCores get work and the pipeline has steps to overlap.
    # Floor of 8 rows = sublane granularity.  No wrapper padding of the
    # activations: the ragged last block is handled by Pallas (masked
    # writeback of out-of-range rows).
    tb = min(block_batch, pl.cdiv(batch, 4))
    tb = max(8, ((tb + 7) // 8) * 8)
    grid = (pl.cdiv(batch, tb),)

    # VMEM footprint at tb=512: ~1.1 MiB total (double-buffered activations +
    # resident weights) -- far under the scoped-VMEM default on all
    # generations, so no explicit vmem_limit_bytes needed.
    out = pl.pallas_call(
        mlp_kernel,
        out_shape=jax.ShapeDtypeStruct((batch, out_cols), jnp.float32),
        grid_spec=pltpu.PrefetchScalarGridSpec(
            num_scalar_prefetch=0,
            grid=grid,
            in_specs=[
                # Activations stream over the batch grid (auto double-buffered,
                # ragged last block handled by Pallas).
                pl.BlockSpec((tb, in_features), lambda i: (i, 0)),
                pl.BlockSpec((tb, in_features), lambda i: (i, 0)),
                # Weights / biases: constant index_map -> fetched once, resident.
                pl.BlockSpec((in_features, hidden), lambda i: (0, 0)),
                pl.BlockSpec((1, hidden), lambda i: (0, 0)),
                pl.BlockSpec((hidden, out_cols), lambda i: (0, 0)),
                pl.BlockSpec((1, out_cols), lambda i: (0, 0)),
            ],
            out_specs=pl.BlockSpec((tb, out_cols), lambda i: (i, 0)),
        ),
        compiler_params=pltpu.CompilerParams(
            # Batch blocks are independent -> shard across TCs where available.
            dimension_semantics=("parallel",),
        ),
    )(input1, input2, w1, b1, w2, b2)

    return out[:, :num_classes]


def init_linear_params(key, in_features, out_features):
    # Mimic torch.nn.Linear default init: U(-1/sqrt(fan_in), 1/sqrt(fan_in)).
    kw, kb = jax.random.split(key)
    bound = 1.0 / (in_features ** 0.5)
    # Stored as (in, out) so the kernel does x @ W.
    w = jax.random.uniform(kw, (in_features, out_features), jnp.float32,
                           minval=-bound, maxval=bound)
    b = jax.random.uniform(kb, (out_features,), jnp.float32,
                           minval=-bound, maxval=bound)
    return w, b


def reference(input1, input2, w1, b1, w2, b2):
    x = input1 + input2
    h = jnp.maximum(x @ w1 + b1[None, :], 0.0)
    return h @ w2 + b2[None, :]


if __name__ == "__main__":
    input_size = 32
    hidden_size = 64
    num_classes = 16

    key = jax.random.PRNGKey(0)
    k1, k2, kx1, kx2 = jax.random.split(key, 4)

    w1, b1 = init_linear_params(k1, input_size, hidden_size)
    w2, b2 = init_linear_params(k2, hidden_size, num_classes)

    # --- divisible batch: 4 full grid steps ---
    batch = 256
    input1 = jax.random.normal(kx1, (batch, input_size), jnp.float32)
    input2 = jax.random.normal(kx2, (batch, input_size), jnp.float32)

    out = mlp_forward(input1, input2, w1, b1, w2, b2)
    jax.block_until_ready(out)
    ref = reference(input1, input2, w1, b1, w2, b2)
    assert out.shape == (batch, num_classes)
    assert jnp.allclose(out, ref, atol=1e-4, rtol=1e-4)

    # --- ragged batch (not a multiple of the tile): exercises the masked
    #     writeback path (no wrapper padding) ---
    batch2 = 200
    out2 = mlp_forward(input1[:batch2], input2[:batch2], w1, b1, w2, b2)
    jax.block_until_ready(out2)
    ref2 = reference(input1[:batch2], input2[:batch2], w1, b1, w2, b2)
    assert out2.shape == (batch2, num_classes)
    assert jnp.allclose(out2, ref2, atol=1e-4, rtol=1e-4)

    print("KERNEL_OK")
</pallas_src>

<mosaic_0001>
module attributes {stable_mosaic.version = 11 : i64} {
  func.func @mlp_kernel(%arg0: i32, %arg1: memref<64x32xf32, #tpu.memory_space<vmem>>, %arg2: memref<64x32xf32, #tpu.memory_space<vmem>>, %arg3: memref<32x64xf32, #tpu.memory_space<vmem>>, %arg4: memref<1x64xf32, #tpu.memory_space<vmem>>, %arg5: memref<64x128xf32, #tpu.memory_space<vmem>>, %arg6: memref<1x128xf32, #tpu.memory_space<vmem>>, %arg7: memref<64x128xf32, #tpu.memory_space<vmem>>) attributes {dimension_semantics = [#tpu.dimension_semantics<parallel>], iteration_bounds = array<i64: 4>, scalar_prefetch = 0 : i64, scratch_operands = 0 : i64, tpu.core_type = #tpu.core_type<tc>, window_params = [{transform_indices = @transform_0, window_bounds = array<i64: 64, 32>}, {transform_indices = @transform_1, window_bounds = array<i64: 64, 32>}, {pipeline_mode = #tpu.pipeline_mode<synchronous>, transform_indices = @transform_2, window_bounds = array<i64: 32, 64>}, {pipeline_mode = #tpu.pipeline_mode<synchronous>, transform_indices = @transform_3, window_bounds = array<i64: 1, 64>}, {pipeline_mode = #tpu.pipeline_mode<synchronous>, transform_indices = @transform_4, window_bounds = array<i64: 64, 128>}, {pipeline_mode = #tpu.pipeline_mode<synchronous>, transform_indices = @transform_5, window_bounds = array<i64: 1, 128>}, {transform_indices = @transform_6, window_bounds = array<i64: 64, 128>}]} {
    %c0 = arith.constant 0 : index
    %c0_0 = arith.constant 0 : index
    %0 = vector.load %arg1[%c0, %c0_0] : memref<64x32xf32, #tpu.memory_space<vmem>>, vector<64x32xf32>
    %c0_1 = arith.constant 0 : index
    %c0_2 = arith.constant 0 : index
    %1 = vector.load %arg3[%c0_1, %c0_2] : memref<32x64xf32, #tpu.memory_space<vmem>>, vector<32x64xf32>
    %cst = arith.constant dense<0.000000e+00> : vector<64x64xf32>
    %2 = tpu.matmul %0, %1, %cst {dimension_numbers = #tpu.dot_dimension_numbers<[1], [0], [0], [1], [0, 0, 1, 1], [], []>} : vector<64x32xf32>, vector<32x64xf32>, vector<64x64xf32> -> vector<64x64xf32>
    %c0_3 = arith.constant 0 : index
    %c0_4 = arith.constant 0 : index
    %3 = vector.load %arg2[%c0_3, %c0_4] : memref<64x32xf32, #tpu.memory_space<vmem>>, vector<64x32xf32>
    %c0_5 = arith.constant 0 : index
    %c0_6 = arith.constant 0 : index
    %4 = vector.load %arg3[%c0_5, %c0_6] : memref<32x64xf32, #tpu.memory_space<vmem>>, vector<32x64xf32>
    %cst_7 = arith.constant dense<0.000000e+00> : vector<64x64xf32>
    %5 = tpu.matmul %3, %4, %cst_7 {dimension_numbers = #tpu.dot_dimension_numbers<[1], [0], [0], [1], [0, 0, 1, 1], [], []>} : vector<64x32xf32>, vector<32x64xf32>, vector<64x64xf32> -> vector<64x64xf32>
    %6 = arith.addf %2, %5 : vector<64x64xf32>
    %c0_8 = arith.constant 0 : index
    %c0_9 = arith.constant 0 : index
    %7 = vector.load %arg4[%c0_8, %c0_9] : memref<1x64xf32, #tpu.memory_space<vmem>>, vector<1x64xf32>
    %8 = vector.broadcast %7 : vector<1x64xf32> to vector<64x64xf32>
    %9 = arith.addf %6, %8 : vector<64x64xf32>
    %cst_10 = arith.constant 0.000000e+00 : f32
    %10 = vector.broadcast %cst_10 : f32 to vector<64x64xf32>
    %11 = arith.maximumf %9, %10 : vector<64x64xf32>
    %c0_11 = arith.constant 0 : index
    %c0_12 = arith.constant 0 : index
    %12 = vector.load %arg5[%c0_11, %c0_12] : memref<64x128xf32, #tpu.memory_space<vmem>>, vector<64x128xf32>
    %cst_13 = arith.constant dense<0.000000e+00> : vector<64x128xf32>
    %13 = tpu.matmul %11, %12, %cst_13 {dimension_numbers = #tpu.dot_dimension_numbers<[1], [0], [0], [1], [0, 0, 1, 1], [], []>} : vector<64x64xf32>, vector<64x128xf32>, vector<64x128xf32> -> vector<64x128xf32>
    %c0_14 = arith.constant 0 : index
    %c0_15 = arith.constant 0 : index
    %14 = vector.load %arg6[%c0_14, %c0_15] : memref<1x128xf32, #tpu.memory_space<vmem>>, vector<1x128xf32>
    %15 = vector.broadcast %14 : vector<1x128xf32> to vector<64x128xf32>
    %16 = arith.addf %13, %15 : vector<64x128xf32>
    %c0_16 = arith.constant 0 : index
    %c0_17 = arith.constant 0 : index
    %17 = vector.load %arg7[%c0_16, %c0_17] : memref<64x128xf32, #tpu.memory_space<vmem>>, vector<64x128xf32>
    tpu.vector_store %arg7[%c0_16, %c0_17], %16 {strides = array<i32>} : memref<64x128xf32, #tpu.memory_space<vmem>>, vector<64x128xf32>,
    return
  }
  func.func @transform_0(%arg0: i32) -> (i32, i32) {
    %c0_i32 = arith.constant 0 : i32
    %c0_i32_0 = arith.constant 0 : i32
    return %arg0, %c0_i32 : i32, i32
  }
  func.func @transform_1(%arg0: i32) -> (i32, i32) {
    %c0_i32 = arith.constant 0 : i32
    %c0_i32_0 = arith.constant 0 : i32
    return %arg0, %c0_i32 : i32, i32
  }
  func.func @transform_2(%arg0: i32) -> (i32, i32) {
    %c0_i32 = arith.constant 0 : i32
    %c0_i32_0 = arith.constant 0 : i32
    %c0_i32_1 = arith.constant 0 : i32
    return %c0_i32, %c0_i32_0 : i32, i32
  }
  func.func @transform_3(%arg0: i32) -> (i32, i32) {
    %c0_i32 = arith.constant 0 : i32
    %c0_i32_0 = arith.constant 0 : i32
    %c0_i32_1 = arith.constant 0 : i32
    return %c0_i32, %c0_i32_0 : i32, i32
  }
  func.func @transform_4(%arg0: i32) -> (i32, i32) {
    %c0_i32 = arith.constant 0 : i32
    %c0_i32_0 = arith.constant 0 : i32
    %c0_i32_1 = arith.constant 0 : i32
    return %c0_i32, %c0_i32_0 : i32, i32
  }
  func.func @transform_5(%arg0: i32) -> (i32, i32) {
    %c0_i32 = arith.constant 0 : i32
    %c0_i32_0 = arith.constant 0 : i32
    %c0_i32_1 = arith.constant 0 : i32
    return %c0_i32, %c0_i32_0 : i32, i32
  }
  func.func @transform_6(%arg0: i32) -> (i32, i32) {
    %c0_i32 = arith.constant 0 : i32
    %c0_i32_0 = arith.constant 0 : i32
    return %arg0, %c0_i32 : i32, i32
  }
}

</mosaic_0001>

<llo_original>
// kernel: tpu_custom_call.1
$region0: #{tpu_custom_call.1}
  #allocation0 [shape = 'u32[]', space=smem, size = 0x4, offset = 0x4, fixed_abs, tag = 'smem constant byte address 0x4 - core index']
  #allocation1 [shape = 'u32[72,128]{1,0:T(1,128)}', space=vmem, size = 0x9000, scoped, tag = 'internal scratch']
  %s0 = inlined_call_operand.vmem [shape: f32[256,32], index: 0, kind: input, shape index: {}]
  %s1 = inlined_call_operand.vmem [shape: f32[256,32], index: 1, kind: input, shape index: {}]
  %s2 = inlined_call_operand.vmem [shape: f32[32,64], index: 2, kind: input, shape index: {}]
  %s3 = inlined_call_operand.vmem [shape: f32[1,64], index: 3, kind: input, shape index: {}]
  %s4 = inlined_call_operand.vmem [shape: f32[64,128], index: 4, kind: input, shape index: {}]
  %s5 = inlined_call_operand.vmem [shape: f32[1,128], index: 5, kind: input, shape index: {}]
  %s6 = inlined_call_operand.hbm [shape: f32[256,128], index: 6, kind: output, shape index: {}]
  %s7 = sld [smem:[#allocation0]]
  $region57: #{tpu_custom_call.1} parent=0
    _
  %s9 = ssub.s32 1, %s7
  %s10 = scalar_select 0, %s9, %s7
  $region1: #{tpu_custom_call.1} parent=0
    #allocation2 [shape = 'u8[65536]{0}', space=vmem, size = 0x10000, scoped, tag = 'output window, operand 0']
    #allocation3 [shape = 's32[2]{0}', space=sflag, size = 0x8, scoped, tag = 'scoped memory for tpu_custom_call.1']
    %11 = vsyncpa [#allocation3], 0
    %s12 = scalar_lea.sflag [#allocation3], 1
    %13 = vsyncpa %s12, 0
    loop: start=0, step=1, limit=6
    $region2: #{tpu_custom_call.1} parent=1 // loop_pre_header
      _
    $region3: #{tpu_custom_call.1} parent=1 // loop_header
      %s15 = sphi 0, %s19
      %p16 = scmp.ge.s32.totalorder %s15, 6
      %s25 = sphi 0, %s27
      %s28 = sphi 0, %s25
      %s29 = sphi 0, %s28
      %s45 = sphi 0, %s29
      %s51 = sphi 0, %s53
      %s54 = sphi 0, %s51
      %s55 = sphi 0, %s54
      %s71 = sphi 0, %s55
      %s75 = sphi 0, %s75
      %s77 = sphi 0, %s75
      %s78 = sphi 0, %s77
      %s92 = sphi 0, %s78
      %s96 = sphi 0, %s96
      %s98 = sphi 0, %s96
      %s99 = sphi 0, %s98
      %s113 = sphi 0, %s99
      %s117 = sphi 0, %s117
      %s119 = sphi 0, %s117
      %s120 = sphi 0, %s119
      %s134 = sphi 0, %s120
      %s138 = sphi 0, %s138
      %s140 = sphi 0, %s138
      %s141 = sphi 0, %s140
      %s155 = sphi 0, %s141
      %s161 = sphi 0, %s163
      %s164 = sphi 0, %s161
      %s165 = sphi 0, %s164
      %s181 = sphi 0, %s165
    $region4: #{tpu_custom_call.1} parent=1 // loop_header_branch
      %18 = sbr.rel (%p16) target = $region8
    $region5: #{tpu_custom_call.1} parent=1 // loop_body
      %s20 = ssub.s32 %s15, 1
      %s21 = ssub.s32 %s15, 2
      %s22 = sadd.s32 %s15, 1
      %s23 = ssub.s32 %s15, %s22
      %p24 = scmp.eq.s32.totalorder %s23, 0
      %s26 = sadd.s32 %s25, 1
      %s27 = scalar_select %p24, %s25, %s26
      %p30 = pneg %p24
      %p31 = scmp.eq.s32.totalorder %s15, 3
      %p32 = por %p30, %p31
      %p33 = scmp.ne.s32.totalorder %s25, %s28
      %p34 = scmp.eq.s32.totalorder %s15, 0
      %p35 = por %p33, %p34
      %p36 = scmp.ne.s32.totalorder %s25, %s28
      %p37 = scmp.eq.s32.totalorder %s20, 3
      %p38 = por %p36, %p37
      %p39 = scmp.ne.s32.totalorder %s28, %s29
      %p40 = scmp.eq.s32.totalorder %s20, 0
      %p41 = por %p39, %p40
      %p42 = scmp.ne.s32.totalorder %s28, %s29
      %p43 = scmp.eq.s32.totalorder %s21, 3
      %p44 = por %p42, %p43
      %p46 = scmp.ne.s32.totalorder %s29, %s45
      %p47 = scmp.eq.s32.totalorder %s21, 0
      %p48 = por %p46, %p47
      %s49 = ssub.s32 %s15, %s22
      %p50 = scmp.eq.s32.totalorder %s49, 0
      %s52 = sadd.s32 %s51, 1
      %s53 = scalar_select %p50, %s51, %s52
      %p56 = pneg %p50
      %p57 = scmp.eq.s32.totalorder %s15, 3
      %p58 = por %p56, %p57
      %p59 = scmp.ne.s32.totalorder %s51, %s54
      %p60 = scmp.eq.s32.totalorder %s15, 0
      %p61 = por %p59, %p60
      %p62 = scmp.ne.s32.totalorder %s51, %s54
      %p63 = scmp.eq.s32.totalorder %s20, 3
      %p64 = por %p62, %p63
      %p65 = scmp.ne.s32.totalorder %s54, %s55
      %p66 = scmp.eq.s32.totalorder %s20, 0
      %p67 = por %p65, %p66
      %p68 = scmp.ne.s32.totalorder %s54, %s55
      %p69 = scmp.eq.s32.totalorder %s21, 3
      %p70 = por %p68, %p69
      %p72 = scmp.ne.s32.totalorder %s55, %s71
      %p73 = scmp.eq.s32.totalorder %s21, 0
      %p74 = por %p72, %p73
      %s76 = sadd.s32 %s75, 1
      %p79 = scmp.eq.s32.totalorder %s15, 3
      %p80 = scmp.ne.s32.totalorder %s75, %s77
      %p81 = scmp.eq.s32.totalorder %s15, 0
      %p82 = por %p80, %p81
      %p83 = scmp.ne.s32.totalorder %s75, %s77
      %p84 = scmp.eq.s32.totalorder %s20, 3
      %p85 = por %p83, %p84
      %p86 = scmp.ne.s32.totalorder %s77, %s78
      %p87 = scmp.eq.s32.totalorder %s20, 0
      %p88 = por %p86, %p87
      %p89 = scmp.ne.s32.totalorder %s77, %s78
      %p90 = scmp.eq.s32.totalorder %s21, 3
      %p91 = por %p89, %p90
      %p93 = scmp.ne.s32.totalorder %s78, %s92
      %p94 = scmp.eq.s32.totalorder %s21, 0
      %p95 = por %p93, %p94
      %s97 = sadd.s32 %s96, 1
      %p100 = scmp.eq.s32.totalorder %s15, 3
      %p101 = scmp.ne.s32.totalorder %s96, %s98
      %p102 = scmp.eq.s32.totalorder %s15, 0
      %p103 = por %p101, %p102
      %p104 = scmp.ne.s32.totalorder %s96, %s98
      %p105 = scmp.eq.s32.totalorder %s20, 3
      %p106 = por %p104, %p105
      %p107 = scmp.ne.s32.totalorder %s98, %s99
      %p108 = scmp.eq.s32.totalorder %s20, 0
      %p109 = por %p107, %p108
      %p110 = scmp.ne.s32.totalorder %s98, %s99
      %p111 = scmp.eq.s32.totalorder %s21, 3
      %p112 = por %p110, %p111
      %p114 = scmp.ne.s32.totalorder %s99, %s113
      %p115 = scmp.eq.s32.totalorder %s21, 0
      %p116 = por %p114, %p115
      %s118 = sadd.s32 %s117, 1
      %p121 = scmp.eq.s32.totalorder %s15, 3
      %p122 = scmp.ne.s32.totalorder %s117, %s119
      %p123 = scmp.eq.s32.totalorder %s15, 0
      %p124 = por %p122, %p123
      %p125 = scmp.ne.s32.totalorder %s117, %s119
      %p126 = scmp.eq.s32.totalorder %s20, 3
      %p127 = por %p125, %p126
      %p128 = scmp.ne.s32.totalorder %s119, %s120
      %p129 = scmp.eq.s32.totalorder %s20, 0
      %p130 = por %p128, %p129
      %p131 = scmp.ne.s32.totalorder %s119, %s120
      %p132 = scmp.eq.s32.totalorder %s21, 3
      %p133 = por %p131, %p132
      %p135 = scmp.ne.s32.totalorder %s120, %s134
      %p136 = scmp.eq.s32.totalorder %s21, 0
      %p137 = por %p135, %p136
      %s139 = sadd.s32 %s138, 1
      %p142 = scmp.eq.s32.totalorder %s15, 3
      %p143 = scmp.ne.s32.totalorder %s138, %s140
      %p144 = scmp.eq.s32.totalorder %s15, 0
      %p145 = por %p143, %p144
      %p146 = scmp.ne.s32.totalorder %s138, %s140
      %p147 = scmp.eq.s32.totalorder %s20, 3
      %p148 = por %p146, %p147
      %p149 = scmp.ne.s32.totalorder %s140, %s141
      %p150 = scmp.eq.s32.totalorder %s20, 0
      %p151 = por %p149, %p150
      %p152 = scmp.ne.s32.totalorder %s140, %s141
      %p153 = scmp.eq.s32.totalorder %s21, 3
      %p154 = por %p152, %p153
      %p156 = scmp.ne.s32.totalorder %s141, %s155
      %p157 = scmp.eq.s32.totalorder %s21, 0
      %p158 = por %p156, %p157
      %s159 = ssub.s32 %s15, %s22
      %p160 = scmp.eq.s32.totalorder %s159, 0
      %s162 = sadd.s32 %s161, 1
      %s163 = scalar_select %p160, %s161, %s162
      %p166 = pneg %p160
      %p167 = scmp.eq.s32.totalorder %s15, 3
      %p168 = por %p166, %p167
      %p169 = scmp.ne.s32.totalorder %s161, %s164
      %p170 = scmp.eq.s32.totalorder %s15, 0
      %p171 = por %p169, %p170
      %p172 = scmp.ne.s32.totalorder %s161, %s164
      %p173 = scmp.eq.s32.totalorder %s20, 3
      %p174 = por %p172, %p173
      %p175 = scmp.ne.s32.totalorder %s164, %s165
      %p176 = scmp.eq.s32.totalorder %s20, 0
      %p177 = por %p175, %p176
      %p178 = scmp.ne.s32.totalorder %s164, %s165
      %p179 = scmp.eq.s32.totalorder %s21, 3
      %p180 = por %p178, %p179
      %p182 = scmp.ne.s32.totalorder %s165, %s181
      %p183 = scmp.eq.s32.totalorder %s21, 0
      %p184 = por %p182, %p183
      %p185 = scmp.le.s32.totalorder 1, %s15
      %p186 = scmp.lt.s32.totalorder %s15, 5
      %p187 = pnand %p185, %p186
      %p188 = pneg %p187
      // Predicated region
      $region9: #{tpu_custom_call.1} parent=5 // pred_check
        _
      $region10: #{tpu_custom_call.1} parent=5 // pred_check_branch
        %190 = sbr.rel (%p187) target = $region12
      $region11: #{tpu_custom_call.1} parent=5 // pred_region
        %s191 = ssub.s32 %s15, 1
        // Predicated region
        $region13: #{tpu_custom_call.1} parent=11 // pred_check
          %p192 = pneg %p88
        $region14: #{tpu_custom_call.1} parent=11 // pred_check_branch
          %194 = sbr.rel (%p192) target = $region16
        $region15: #{tpu_custom_call.1} parent=11 // pred_region
          _
        $region16: #{tpu_custom_call.1} parent=11 // pred_fallthru
          _
        // Predicated region
        $region17: #{tpu_custom_call.1} parent=11 // pred_check
          %p195 = pneg %p109
        $region18: #{tpu_custom_call.1} parent=11 // pred_check_branch
          %197 = sbr.rel (%p195) target = $region20
        $region19: #{tpu_custom_call.1} parent=11 // pred_region
          _
        $region20: #{tpu_custom_call.1} parent=11 // pred_fallthru
          _
        // Predicated region
        $region21: #{tpu_custom_call.1} parent=11 // pred_check
          %p198 = pneg %p130
        $region22: #{tpu_custom_call.1} parent=11 // pred_check_branch
          %200 = sbr.rel (%p198) target = $region24
        $region23: #{tpu_custom_call.1} parent=11 // pred_region
          _
        $region24: #{tpu_custom_call.1} parent=11 // pred_fallthru
          _
        // Predicated region
        $region25: #{tpu_custom_call.1} parent=11 // pred_check
          %p201 = pneg %p151
        $region26: #{tpu_custom_call.1} parent=11 // pred_check_branch
          %203 = sbr.rel (%p201) target = $region28
        $region27: #{tpu_custom_call.1} parent=11 // pred_region
          _
        $region28: #{tpu_custom_call.1} parent=11 // pred_fallthru
          _
      $region12: #{tpu_custom_call.1} parent=5 // pred_fallthru
        _
      %p204 = scmp.lt.s32.totalorder %s15, 4
      // Predicated region
      $region29: #{tpu_custom_call.1} parent=5 // pred_check
        %p205 = pneg %p204
      $region30: #{tpu_custom_call.1} parent=5 // pred_check_branch
        %207 = sbr.rel (%p205) target = $region32
      $region31: #{tpu_custom_call.1} parent=5 // pred_region
        // Predicated region
        $region33: #{tpu_custom_call.1} parent=31 // pred_check
          %p208 = pneg %p35
        $region34: #{tpu_custom_call.1} parent=31 // pred_check_branch
          %210 = sbr.rel (%p208) target = $region36
        $region35: #{tpu_custom_call.1} parent=31 // pred_region
          %s211 = smul.u32 8, %s15
          %p212 = scmp.lt.s32.totalorder %s211, 31
          %s213 = scalar_select %p212, %s211, 31
          %s214 = smul.addr %s213, 8
          %s215 = scalar_lea.vmem %s0, %s214
          %s216 = smul.u32 8, %s15
        $region36: #{tpu_custom_call.1} parent=31 // pred_fallthru
          _
        // Predicated region
        $region37: #{tpu_custom_call.1} parent=31 // pred_check
          %p217 = pneg %p61
        $region38: #{tpu_custom_call.1} parent=31 // pred_check_branch
          %219 = sbr.rel (%p217) target = $region40
        $region39: #{tpu_custom_call.1} parent=31 // pred_region
          %s220 = smul.u32 8, %s15
          %p221 = scmp.lt.s32.totalorder %s220, 31
          %s222 = scalar_select %p221, %s220, 31
          %s223 = smul.addr %s222, 8
          %s224 = scalar_lea.vmem %s1, %s223
          %s225 = smul.u32 8, %s15
        $region40: #{tpu_custom_call.1} parent=31 // pred_fallthru
          _
      $region32: #{tpu_custom_call.1} parent=5 // pred_fallthru
        _
      %p226 = scmp.le.s32.totalorder 1, %s15
      %p227 = scmp.lt.s32.totalorder %s15, 5
      %p228 = pnand %p226, %p227
      %p229 = pneg %p228
      // Predicated region
      $region41: #{tpu_custom_call.1} parent=5 // pred_check
        _
      $region42: #{tpu_custom_call.1} parent=5 // pred_check_branch
        %231 = sbr.rel (%p228) target = $region44
      $region43: #{tpu_custom_call.1} parent=5 // pred_region
        %s232 = ssub.s32 %s15, 1
        %s233 = smul.u32 8, %s20
        %p234 = scmp.lt.s32.totalorder %s233, 31
        %s235 = scalar_select %p234, %s233, 31
        %s236 = smul.addr %s235, 8
        %s237 = scalar_lea.vmem %s0, %s236
        %p238 = pneg %p41
        %p239 = pneg %p38
        %s240 = smul.u32 8, %s20
        %p241 = scmp.lt.s32.totalorder %s240, 31
        %s242 = scalar_select %p241, %s240, 31
        %s243 = smul.addr %s242, 8
        %s244 = scalar_lea.vmem %s1, %s243
        %p245 = pneg %p67
        %p246 = pneg %p64
        %p247 = pneg %p88
        %p248 = pneg %p85
        %p249 = pneg %p109
        %p250 = pneg %p106
        %p251 = pneg %p130
        %p252 = pneg %p127
        %p253 = pneg %p151
        %p254 = pneg %p148
        %p255 = pneg %p177
        %p256 = pneg %p174
        %s257 = sand.u32 %s164, 1
        %s258 = scalar_lea.sflag [#allocation3], %s257
        %s259 = sand.u32 %s164, 1
        %s260 = smul.addr %s259, 64
        %s261 = scalar_lea.vmem [#allocation2], %s260
        %s262 = smul.u32 8, %s20
        %p263 = scmp.lt.s32.totalorder %s262, 31
        %s264 = scalar_select %p263, %s262, 31
        %s265 = smul.addr %s264, 8
        %s266 = scalar_lea.vmem %s0, %s265
        %s267 = smul.u32 8, %s20
        %s268 = smul.u32 8, %s20
        %p269 = scmp.lt.s32.totalorder %s268, 31
        %s270 = scalar_select %p269, %s268, 31
        %s271 = smul.addr %s270, 8
        %s272 = scalar_lea.vmem %s1, %s271
        %s273 = smul.u32 8, %s20
        %s274 = smul.u32 8, %s20
        %v275 = vld [vmem:[%s266] sm:$0xff]
        %v276 = vld [vmem:[%s266 + $0x8] sm:$0xff]
        %v277 = vld [vmem:[%s266 + $0x10] sm:$0xff]
        %v278 = vld [vmem:[%s266 + $0x18] sm:$0xff]
        %v279 = vld [vmem:[%s266 + $0x20] sm:$0xff]
        %v280 = vld [vmem:[%s266 + $0x28] sm:$0xff]
        %v281 = vld [vmem:[%s266 + $0x30] sm:$0xff]
        %v282 = vld [vmem:[%s266 + $0x38] sm:$0xff]
        %v283 = vld [vmem:[%s2] sm:$0xff]
        %v284 = vld [vmem:[%s2 + $0x8] sm:$0xff]
        %v285 = vld [vmem:[%s2 + $0x10] sm:$0xff]
        %v286 = vld [vmem:[%s2 + $0x18] sm:$0xff]
        %v287 = vld [vmem:[%s272] sm:$0xff]
        %v288 = vld [vmem:[%s272 + $0x8] sm:$0xff]
        %v289 = vld [vmem:[%s272 + $0x10] sm:$0xff]
        %v290 = vld [vmem:[%s272 + $0x18] sm:$0xff]
        %v291 = vld [vmem:[%s272 + $0x20] sm:$0xff]
        %v292 = vld [vmem:[%s272 + $0x28] sm:$0xff]
        %v293 = vld [vmem:[%s272 + $0x30] sm:$0xff]
        %v294 = vld [vmem:[%s272 + $0x38] sm:$0xff]
        %vm295 = vcmask 261120
        %v297 = vsel %vm295, %v287, 0
        %v300 = vsel %vm295, %v288, 0
        %v303 = vsel %vm295, %v289, 0
        %v306 = vsel %vm295, %v290, 0
        %v309 = vsel %vm295, %v291, 0
        %v312 = vsel %vm295, %v292, 0
        %v315 = vsel %vm295, %v293, 0
        %v318 = vsel %vm295, %v294, 0
        %320 = vmatpush.msra.mxu0 0.0
        %321 = vmatpush.msra.mxu0 0.0
        %322 = vmatpush.msra.mxu0 0.0
        %323 = vmatpush.msra.mxu0 0.0
        %324 = vmatpush.msra.mxu0 0.0
        %325 = vmatpush.msra.mxu0 0.0
        %326 = vmatpush.msra.mxu0 0.0
        %327 = vmatpush.msra.mxu0 0.0
        %328 = vmatpush.msra.mxu0 0.0
        %329 = vmatpush.msra.mxu0 0.0
        %330 = vmatpush.msra.mxu0 0.0
        %331 = vmatpush.msra.mxu0 0.0
        %332 = vmatpush.msra.mxu0 %v286
        %333 = vmatpush.msra.mxu0 %v285
        %334 = vmatpush.msra.mxu0 %v284
        %335 = vmatpush.msra.mxu0 %v283
        %336 = vmatmul.f32.gmra.mxu0 %v297
        %v337 = vpop.f32.mrf.mxu0
        %v338 = vadd.f32 0.0, %v337
        %339 = vmatmul.f32.gmra.mxu0 %v300
        %v340 = vpop.f32.mrf.mxu0
        %v341 = vadd.f32 0.0, %v340
        %342 = vmatmul.f32.gmra.mxu0 %v303
        %v343 = vpop.f32.mrf.mxu0
        %v344 = vadd.f32 0.0, %v343
        %345 = vmatmul.f32.gmra.mxu0 %v306
        %v346 = vpop.f32.mrf.mxu0
        %v347 = vadd.f32 0.0, %v346
        %348 = vmatmul.f32.gmra.mxu0 %v309
        %v349 = vpop.f32.mrf.mxu0
        %v350 = vadd.f32 0.0, %v349
        %351 = vmatmul.f32.gmra.mxu0 %v312
        %v352 = vpop.f32.mrf.mxu0
        %v353 = vadd.f32 0.0, %v352
        %354 = vmatmul.f32.gmra.mxu0 %v315
        %v355 = vpop.f32.mrf.mxu0
        %v356 = vadd.f32 0.0, %v355
        %357 = vmatmul.f32.gmra.mxu0 %v318
        %v358 = vpop.f32.mrf.mxu0
        %v359 = vadd.f32 0.0, %v358
        %360 = vdwg.mxu0
        %v362 = vsel %vm295, %v275, 0
        %v365 = vsel %vm295, %v276, 0
        %v368 = vsel %vm295, %v277, 0
        %v371 = vsel %vm295, %v278, 0
        %v374 = vsel %vm295, %v279, 0
        %v377 = vsel %vm295, %v280, 0
        %v380 = vsel %vm295, %v281, 0
        %v383 = vsel %vm295, %v282, 0
        %385 = vmatpush.msra.mxu0 0.0
        %386 = vmatpush.msra.mxu0 0.0
        %387 = vmatpush.msra.mxu0 0.0
        %388 = vmatpush.msra.mxu0 0.0
        %389 = vmatpush.msra.mxu0 0.0
        %390 = vmatpush.msra.mxu0 0.0
        %391 = vmatpush.msra.mxu0 0.0
        %392 = vmatpush.msra.mxu0 0.0
        %393 = vmatpush.msra.mxu0 0.0
        %394 = vmatpush.msra.mxu0 0.0
        %395 = vmatpush.msra.mxu0 0.0
        %396 = vmatpush.msra.mxu0 0.0
        %397 = vmatpush.msra.mxu0 %v286
        %398 = vmatpush.msra.mxu0 %v285
        %399 = vmatpush.msra.mxu0 %v284
        %400 = vmatpush.msra.mxu0 %v283
        %401 = vmatmul.f32.gmra.mxu0 %v362
        %v402 = vpop.f32.mrf.mxu0
        %v403 = vadd.f32 %v338, %v402
        %404 = vmatmul.f32.gmra.mxu0 %v365
        %v405 = vpop.f32.mrf.mxu0
        %v406 = vadd.f32 %v341, %v405
        %407 = vmatmul.f32.gmra.mxu0 %v368
        %v408 = vpop.f32.mrf.mxu0
        %v409 = vadd.f32 %v344, %v408
        %410 = vmatmul.f32.gmra.mxu0 %v371
        %v411 = vpop.f32.mrf.mxu0
        %v412 = vadd.f32 %v347, %v411
        %413 = vmatmul.f32.gmra.mxu0 %v374
        %v414 = vpop.f32.mrf.mxu0
        %v415 = vadd.f32 %v350, %v414
        %416 = vmatmul.f32.gmra.mxu0 %v377
        %v417 = vpop.f32.mrf.mxu0
        %v418 = vadd.f32 %v353, %v417
        %419 = vmatmul.f32.gmra.mxu0 %v380
        %v420 = vpop.f32.mrf.mxu0
        %v421 = vadd.f32 %v356, %v420
        %422 = vmatmul.f32.gmra.mxu0 %v383
        %v423 = vpop.f32.mrf.mxu0
        %v424 = vadd.f32 %v359, %v423
        %425 = vdwg.mxu0
        %v426 = vld [vmem:[%s3] sm:$0x1]
        %v428 = vperm.slane %v426, 0
        %v430 = vadd.f32 %v403, %v428
        %v431 = vadd.f32 %v406, %v428
        %v432 = vadd.f32 %v409, %v428
        %v433 = vadd.f32 %v412, %v428
        %v434 = vadd.f32 %v415, %v428
        %v435 = vadd.f32 %v418, %v428
        %v436 = vadd.f32 %v421, %v428
        %v437 = vadd.f32 %v424, %v428
        %v438 = vmax.f32 %v430, 0.0
        %v439 = vmax.f32 %v431, 0.0
        %v440 = vmax.f32 %v432, 0.0
        %v441 = vmax.f32 %v433, 0.0
        %v442 = vmax.f32 %v434, 0.0
        %v443 = vmax.f32 %v435, 0.0
        %v444 = vmax.f32 %v436, 0.0
        %v445 = vmax.f32 %v437, 0.0
        %v446 = vld [vmem:[%s4] sm:$0xff]
        %v447 = vld [vmem:[%s4 + $0x8] sm:$0xff]
        %v448 = vld [vmem:[%s4 + $0x10] sm:$0xff]
        %v449 = vld [vmem:[%s4 + $0x18] sm:$0xff]
        %v450 = vld [vmem:[%s4 + $0x20] sm:$0xff]
        %v451 = vld [vmem:[%s4 + $0x28] sm:$0xff]
        %v452 = vld [vmem:[%s4 + $0x30] sm:$0xff]
        %v453 = vld [vmem:[%s4 + $0x38] sm:$0xff]
        %v454 = vld [vmem:[%s5] sm:$0x1]
        %v456 = vperm.slane %v454, 0
        %vm458 = vcmask 523264
        %v460 = vsel %vm458, %v438, 0
        %v463 = vsel %vm458, %v439, 0
        %v466 = vsel %vm458, %v440, 0
        %v469 = vsel %vm458, %v441, 0
        %v472 = vsel %vm458, %v442, 0
        %v475 = vsel %vm458, %v443, 0
        %v478 = vsel %vm458, %v444, 0
        %v481 = vsel %vm458, %v445, 0
        %483 = vmatpush.msra.mxu0 0.0
        %484 = vmatpush.msra.mxu0 0.0
        %485 = vmatpush.msra.mxu0 0.0
        %486 = vmatpush.msra.mxu0 0.0
        %487 = vmatpush.msra.mxu0 0.0
        %488 = vmatpush.msra.mxu0 0.0
        %489 = vmatpush.msra.mxu0 0.0
        %490 = vmatpush.msra.mxu0 0.0
        %491 = vmatpush.msra.mxu0 %v453
        %492 = vmatpush.msra.mxu0 %v452
        %493 = vmatpush.msra.mxu0 %v451
        %494 = vmatpush.msra.mxu0 %v450
        %495 = vmatpush.msra.mxu0 %v449
        %496 = vmatpush.msra.mxu0 %v448
        %497 = vmatpush.msra.mxu0 %v447
        %498 = vmatpush.msra.mxu0 %v446
        %499 = vmatmul.f32.gmra.mxu0 %v460
        %v500 = vpop.f32.mrf.mxu0
        %v501 = vadd.f32 %v456, %v500
        %502 = vmatmul.f32.gmra.mxu0 %v463
        %v503 = vpop.f32.mrf.mxu0
        %v504 = vadd.f32 %v456, %v503
        %505 = vmatmul.f32.gmra.mxu0 %v466
        %v506 = vpop.f32.mrf.mxu0
        %v507 = vadd.f32 %v456, %v506
        %508 = vmatmul.f32.gmra.mxu0 %v469
        %v509 = vpop.f32.mrf.mxu0
        %v510 = vadd.f32 %v456, %v509
        %511 = vmatmul.f32.gmra.mxu0 %v472
        %v512 = vpop.f32.mrf.mxu0
        %v513 = vadd.f32 %v456, %v512
        %514 = vmatmul.f32.gmra.mxu0 %v475
        %v515 = vpop.f32.mrf.mxu0
        %v516 = vadd.f32 %v456, %v515
        %517 = vmatmul.f32.gmra.mxu0 %v478
        %v518 = vpop.f32.mrf.mxu0
        %v519 = vadd.f32 %v456, %v518
        %520 = vmatmul.f32.gmra.mxu0 %v481
        %v521 = vpop.f32.mrf.mxu0
        %v522 = vadd.f32 %v456, %v521
        %523 = vdwg.mxu0
        %524 = vst [vmem:[%s261] sm:$0xff] %v501
        %525 = vst [vmem:[%s261 + $0x8] sm:$0xff] %v504
        %526 = vst [vmem:[%s261 + $0x10] sm:$0xff] %v507
        %527 = vst [vmem:[%s261 + $0x18] sm:$0xff] %v510
        %528 = vst [vmem:[%s261 + $0x20] sm:$0xff] %v513
        %529 = vst [vmem:[%s261 + $0x28] sm:$0xff] %v516
        %530 = vst [vmem:[%s261 + $0x30] sm:$0xff] %v519
        %531 = vst [vmem:[%s261 + $0x38] sm:$0xff] %v522
        %s532 = sand.u32 %s164, 1
        %s533 = scalar_lea.sflag [#allocation3], %s532
        %s534 = sand.u32 %s164, 1
        %s535 = smul.addr %s534, 64
        %s536 = scalar_lea.vmem [#allocation2], %s535
        // Predicated region
        $region45: #{tpu_custom_call.1} parent=43 // pred_check
          %p537 = pneg %p174
        $region46: #{tpu_custom_call.1} parent=43 // pred_check_branch
          %539 = sbr.rel (%p537) target = $region48
        $region47: #{tpu_custom_call.1} parent=43 // pred_region
          %s540 = smul.u32 8, %s20
          %542 = vsyncadd %s533, 0
          %s543 = smul.addr %s540, 8
          %s544 = scalar_lea.hbm %s6, %s543
          %s545 = sshll.u32 %s536, 4
          %s546 = int_to_ptr.vmem [resolvable:$true] %s545
          %s547 = sshll.u32 %s544, 4
          %s548 = int_to_ptr.hbm [resolvable:$true] %s547
          %553 = dma.vmem_to_hbm [thread:$0]  %s546, 1024, %s548, %s533, 128, 128, 8
        $region48: #{tpu_custom_call.1} parent=43 // pred_fallthru
          _
      $region44: #{tpu_custom_call.1} parent=5 // pred_fallthru
        _
      %p554 = scmp.le.s32.totalorder 2, %s15
      // Predicated region
      $region49: #{tpu_custom_call.1} parent=5 // pred_check
        %p555 = pneg %p554
      $region50: #{tpu_custom_call.1} parent=5 // pred_check_branch
        %557 = sbr.rel (%p555) target = $region52
      $region51: #{tpu_custom_call.1} parent=5 // pred_region
        %s558 = ssub.s32 %s15, 2
        // Predicated region
        $region53: #{tpu_custom_call.1} parent=51 // pred_check
          %p559 = pneg %p180
        $region54: #{tpu_custom_call.1} parent=51 // pred_check_branch
          %561 = sbr.rel (%p559) target = $region56
        $region55: #{tpu_custom_call.1} parent=51 // pred_region
          %s562 = sand.u32 %s165, 1
          %s563 = scalar_lea.sflag [#allocation3], %s562
          %s564 = sand.u32 %s165, 1
          %s565 = smul.addr %s564, 64
          %s566 = scalar_lea.vmem [#allocation2], %s565
          %568 = dma.done %s563, 1024
        $region56: #{tpu_custom_call.1} parent=51 // pred_fallthru
          _
      $region52: #{tpu_custom_call.1} parent=5 // pred_fallthru
        _
    $region6: #{tpu_custom_call.1} parent=1 // loop_footer
      %s19 = sadd.s32 1, %s15
    $region7: #{tpu_custom_call.1} parent=1 // loop_footer_branch
      %14 = sbr.rel target = $region3
    $region8: #{tpu_custom_call.1} parent=1 // loop_exit
      _
    %569 = vsyncpa [#allocation3], 1
    %s570 = scalar_lea.sflag [#allocation3], 1
    %571 = vsyncpa %s570, 1

</llo_original>
